<compile_context>
chip_gen: v6e
topology: v6e:2x2x1
jax: 0.10.0
libtpu: 0.0.40
codegen_flags: <defaults>
</compile_context>

<pallas_src>
import jax
import jax.numpy as jnp
from jax.experimental import pallas as pl
from jax.experimental.pallas import tpu as pltpu


# ----------------------------- Pallas kernel ------------------------------ #
def sparse_mlp_kernel(x_ref, w1_ref, b1_ref, w2_ref, b2_ref, o_ref):
    # x_ref:  [TILE_B, 784] bf16   activation tile
    # w1_ref: [784, 128]    bf16   fc1 weight (mask folded, transposed)
    # b1_ref: [1, 128]      bf16
    # w2_ref: [128, 128]    bf16   fc2 weight (mask folded, transposed, padded)
    # b2_ref: [1, 128]      bf16   fc2 bias, zero padded to 128 lanes
    # o_ref:  [TILE_B, 128] bf16   lane-dense output (cols 10..127 are zero)
    h = jnp.dot(x_ref[...], w1_ref[...], preferred_element_type=jnp.float32)
    h = h + b1_ref[...].astype(jnp.float32)
    h = jnp.maximum(h, 0.0)                                   # relu (f32)
    out = jnp.dot(h.astype(jnp.bfloat16), w2_ref[...],
                  preferred_element_type=jnp.float32)
    out = out + b2_ref[...].astype(jnp.float32)
    o_ref[...] = out.astype(o_ref.dtype)


# ------------------------------ wrapper ------------------------------------ #
def _round_up(n, m):
    return ((n + m - 1) // m) * m


def _cdiv(a, b):
    return -(-a // b)


def _choose_tile_b(B):
    if B <= 256:
        # Single full-extent tile: always a legal block shape, no padding.
        return B
    # Large B: 256..1024-row tiles, aiming for >= 4 grid steps so the
    # "parallel" axis can shard across TensorCores (v7x megacore).
    return max(256, min(1024, _round_up(_cdiv(B, 4), 256)))


def sparse_mlp_forward(x2d, w1mt, b1, w2mt_pad, b2_pad):
    """x2d: [B,784] bf16; w1mt: [784,128] bf16; b1: [1,128] bf16;
    w2mt_pad: [128,128] bf16; b2_pad: [1,128] bf16  ->  [B,10] bf16."""
    B = x2d.shape[0]
    tile_b = _choose_tile_b(B)
    grid = (_cdiv(B, tile_b),)   # no input padding; Pallas masks the tail tile

    out = pl.pallas_call(
        sparse_mlp_kernel,
        out_shape=jax.ShapeDtypeStruct((B, 128), jnp.bfloat16),
        grid=grid,
        in_specs=[
            pl.BlockSpec((tile_b, 784), lambda i: (i, 0)),   # activation tile
            pl.BlockSpec((784, 128), lambda i: (0, 0)),      # fc1 W (resident)
            pl.BlockSpec((1, 128), lambda i: (0, 0)),        # fc1 b (resident)
            pl.BlockSpec((128, 128), lambda i: (0, 0)),      # fc2 W (resident)
            pl.BlockSpec((1, 128), lambda i: (0, 0)),        # fc2 b (resident)
        ],
        out_specs=pl.BlockSpec((tile_b, 128), lambda i: (i, 0)),
        compiler_params=pltpu.CompilerParams(
            dimension_semantics=("parallel",)),
    )(x2d, w1mt, b1, w2mt_pad, b2_pad)

    # Lane-dense kernel output; slice off the 118 zero pad columns (bf16, cheap).
    return out[:, :10]


# --------------------------- parameter / mask setup ------------------------ #
def create_mask(weight, sparsity_rate):
    """Replicates SparseNet.create_mask: zero out the k smallest-|w| entries."""
    # TODO(synk): argsort tie-breaking may differ from torch.topk on exact ties.
    k = int(sparsity_rate * weight.size)
    flat_abs = jnp.abs(weight).reshape(-1)
    prune_idx = jnp.argsort(flat_abs)[:k]          # k smallest magnitudes
    mask_flat = jnp.ones((weight.size,), dtype=jnp.float32)
    mask_flat = mask_flat.at[prune_idx].set(0.0)
    return mask_flat.reshape(weight.shape)


def init_sparse_net(key, sparsity_rate=0.5):
    """Deterministic init mimicking nn.Linear's uniform(-1/sqrt(fan_in), ...).

    Masks are folded into the weights here (static, as in the PyTorch forward),
    weights are stored transposed to [in, out] and cast to bf16, and the fc2
    path is zero-padded to 128 output lanes so the kernel gets its preferred
    layout/dtype with zero per-call cost.
    """
    k1, k2, k3, k4 = jax.random.split(key, 4)
    bound1 = 1.0 / jnp.sqrt(784.0)
    bound2 = 1.0 / jnp.sqrt(128.0)
    # PyTorch layout: fc1.weight [128, 784], fc2.weight [10, 128]
    w1 = jax.random.uniform(k1, (128, 784), jnp.float32, -bound1, bound1)
    b1 = jax.random.uniform(k2, (128,), jnp.float32, -bound1, bound1)
    w2 = jax.random.uniform(k3, (10, 128), jnp.float32, -bound2, bound2)
    b2 = jax.random.uniform(k4, (10,), jnp.float32, -bound2, bound2)
    mask1 = create_mask(w1, sparsity_rate)
    mask2 = create_mask(w2, sparsity_rate)

    # Kernel-ready tensors (mask folded in, transposed, fc2 lane-padded, bf16).
    w1mt = (w1 * mask1).T                                   # [784, 128]
    w2mt = (w2 * mask2).T                                   # [128, 10]
    w2mt_pad = jnp.zeros((128, 128), jnp.float32).at[:, :10].set(w2mt)
    b1_row = b1.reshape(1, 128)
    b2_pad = jnp.zeros((1, 128), jnp.float32).at[0, :10].set(b2)

    return dict(
        # kernel-ready bf16 params
        w1mt=w1mt.astype(jnp.bfloat16),
        b1=b1_row.astype(jnp.bfloat16),
        w2mt_pad=w2mt_pad.astype(jnp.bfloat16),
        b2_pad=b2_pad.astype(jnp.bfloat16),
        # raw f32 params kept only for the reference check / mask mutation
        w1=w1, b1_raw=b1, mask1=mask1, w2=w2, b2_raw=b2, mask2=mask2,
    )


def sparse_net_apply(params, x):
    """Forward pass matching SparseNet.forward (x may be [B,1,28,28] etc.).

    Activations are consumed in bf16; producers should ideally hand the kernel
    bf16 directly so the cast below is a no-op (no extra HBM pass).
    """
    x2d = x.reshape(-1, 784)
    if x2d.dtype != jnp.bfloat16:
        x2d = x2d.astype(jnp.bfloat16)
    return sparse_mlp_forward(
        x2d, params["w1mt"], params["b1"], params["w2mt_pad"], params["b2_pad"])


# ---------------------------------- main ----------------------------------- #
if __name__ == "__main__":
    key = jax.random.PRNGKey(0)
    pkey, xkey = jax.random.split(key)

    params = init_sparse_net(pkey, sparsity_rate=0.5)

    # MNIST-like input, produced in bf16 upstream: [B, 1, 28, 28].
    x = jax.random.normal(xkey, (8, 1, 28, 28), dtype=jnp.bfloat16)

    out = sparse_net_apply(params, x)
    out = jax.block_until_ready(out)

    # Pure-JAX f32 reference (mirrors the PyTorch forward exactly, same inputs).
    x2d = x.reshape(-1, 784).astype(jnp.float32)
    ref = x2d @ (params["w1"] * params["mask1"]).T + params["b1_raw"]
    ref = jnp.maximum(ref, 0.0)
    ref = ref @ (params["w2"] * params["mask2"]).T + params["b2_raw"]

    assert out.shape == (8, 10)
    assert out.dtype == jnp.bfloat16
    # bf16 inputs/outputs with f32 accumulation -> ~1e-2 relative error budget.
    assert jnp.allclose(out.astype(jnp.float32), ref, atol=5e-2, rtol=5e-2)

    print("KERNEL_OK")
</pallas_src>

<mosaic_0001>
module attributes {stable_mosaic.version = 11 : i64} {
  func.func @sparse_mlp_kernel(%arg0: i32, %arg1: memref<8x784xbf16, #tpu.memory_space<vmem>>, %arg2: memref<784x128xbf16, #tpu.memory_space<vmem>>, %arg3: memref<1x128xbf16, #tpu.memory_space<vmem>>, %arg4: memref<128x128xbf16, #tpu.memory_space<vmem>>, %arg5: memref<1x128xbf16, #tpu.memory_space<vmem>>, %arg6: memref<8x128xbf16, #tpu.memory_space<vmem>>) attributes {dimension_semantics = [#tpu.dimension_semantics<parallel>], iteration_bounds = array<i64: 1>, scalar_prefetch = 0 : i64, scratch_operands = 0 : i64, tpu.core_type = #tpu.core_type<tc>, window_params = [{transform_indices = @transform_0, window_bounds = array<i64: 8, 784>}, {pipeline_mode = #tpu.pipeline_mode<synchronous>, transform_indices = @transform_1, window_bounds = array<i64: 784, 128>}, {pipeline_mode = #tpu.pipeline_mode<synchronous>, transform_indices = @transform_2, window_bounds = array<i64: 1, 128>}, {pipeline_mode = #tpu.pipeline_mode<synchronous>, transform_indices = @transform_3, window_bounds = array<i64: 128, 128>}, {pipeline_mode = #tpu.pipeline_mode<synchronous>, transform_indices = @transform_4, window_bounds = array<i64: 1, 128>}, {transform_indices = @transform_5, window_bounds = array<i64: 8, 128>}]} {
    %c0 = arith.constant 0 : index
    %c0_0 = arith.constant 0 : index
    %0 = vector.load %arg1[%c0, %c0_0] : memref<8x784xbf16, #tpu.memory_space<vmem>>, vector<8x784xbf16>
    %c0_1 = arith.constant 0 : index
    %c0_2 = arith.constant 0 : index
    %1 = vector.load %arg2[%c0_1, %c0_2] : memref<784x128xbf16, #tpu.memory_space<vmem>>, vector<784x128xbf16>
    %cst = arith.constant dense<0.000000e+00> : vector<8x128xf32>
    %2 = tpu.matmul %0, %1, %cst {dimension_numbers = #tpu.dot_dimension_numbers<[1], [0], [0], [1], [0, 0, 1, 1], [], []>} : vector<8x784xbf16>, vector<784x128xbf16>, vector<8x128xf32> -> vector<8x128xf32>
    %c0_3 = arith.constant 0 : index
    %c0_4 = arith.constant 0 : index
    %3 = vector.load %arg3[%c0_3, %c0_4] : memref<1x128xbf16, #tpu.memory_space<vmem>>, vector<1x128xbf16>
    %4 = arith.extf %3 : vector<1x128xbf16> to vector<1x128xf32>
    %5 = vector.broadcast %4 : vector<1x128xf32> to vector<8x128xf32>
    %6 = arith.addf %2, %5 : vector<8x128xf32>
    %cst_5 = arith.constant 0.000000e+00 : f32
    %7 = vector.broadcast %cst_5 : f32 to vector<8x128xf32>
    %8 = arith.maximumf %6, %7 : vector<8x128xf32>
    %9 = arith.truncf %8 : vector<8x128xf32> to vector<8x128xbf16>
    %c0_6 = arith.constant 0 : index
    %c0_7 = arith.constant 0 : index
    %10 = vector.load %arg4[%c0_6, %c0_7] : memref<128x128xbf16, #tpu.memory_space<vmem>>, vector<128x128xbf16>
    %cst_8 = arith.constant dense<0.000000e+00> : vector<8x128xf32>
    %11 = tpu.matmul %9, %10, %cst_8 {dimension_numbers = #tpu.dot_dimension_numbers<[1], [0], [0], [1], [0, 0, 1, 1], [], []>} : vector<8x128xbf16>, vector<128x128xbf16>, vector<8x128xf32> -> vector<8x128xf32>
    %c0_9 = arith.constant 0 : index
    %c0_10 = arith.constant 0 : index
    %12 = vector.load %arg5[%c0_9, %c0_10] : memref<1x128xbf16, #tpu.memory_space<vmem>>, vector<1x128xbf16>
    %13 = arith.extf %12 : vector<1x128xbf16> to vector<1x128xf32>
    %14 = vector.broadcast %13 : vector<1x128xf32> to vector<8x128xf32>
    %15 = arith.addf %11, %14 : vector<8x128xf32>
    %16 = arith.truncf %15 : vector<8x128xf32> to vector<8x128xbf16>
    %c0_11 = arith.constant 0 : index
    %c0_12 = arith.constant 0 : index
    %17 = vector.load %arg6[%c0_11, %c0_12] : memref<8x128xbf16, #tpu.memory_space<vmem>>, vector<8x128xbf16>
    tpu.vector_store %arg6[%c0_11, %c0_12], %16 {strides = array<i32>} : memref<8x128xbf16, #tpu.memory_space<vmem>>, vector<8x128xbf16>,
    return
  }
  func.func @transform_0(%arg0: i32) -> (i32, i32) {
    %c0_i32 = arith.constant 0 : i32
    %c0_i32_0 = arith.constant 0 : i32
    return %arg0, %c0_i32 : i32, i32
  }
  func.func @transform_1(%arg0: i32) -> (i32, i32) {
    %c0_i32 = arith.constant 0 : i32
    %c0_i32_0 = arith.constant 0 : i32
    %c0_i32_1 = arith.constant 0 : i32
    return %c0_i32, %c0_i32_0 : i32, i32
  }
  func.func @transform_2(%arg0: i32) -> (i32, i32) {
    %c0_i32 = arith.constant 0 : i32
    %c0_i32_0 = arith.constant 0 : i32
    %c0_i32_1 = arith.constant 0 : i32
    return %c0_i32, %c0_i32_0 : i32, i32
  }
  func.func @transform_3(%arg0: i32) -> (i32, i32) {
    %c0_i32 = arith.constant 0 : i32
    %c0_i32_0 = arith.constant 0 : i32
    %c0_i32_1 = arith.constant 0 : i32
    return %c0_i32, %c0_i32_0 : i32, i32
  }
  func.func @transform_4(%arg0: i32) -> (i32, i32) {
    %c0_i32 = arith.constant 0 : i32
    %c0_i32_0 = arith.constant 0 : i32
    %c0_i32_1 = arith.constant 0 : i32
    return %c0_i32, %c0_i32_0 : i32, i32
  }
  func.func @transform_5(%arg0: i32) -> (i32, i32) {
    %c0_i32 = arith.constant 0 : i32
    %c0_i32_0 = arith.constant 0 : i32
    return %arg0, %c0_i32 : i32, i32
  }
}

</mosaic_0001>

<llo_original>
// kernel: tpu_custom_call.1
$region0: #{tpu_custom_call.1}
  #allocation0 [shape = 'u32[]', space=smem, size = 0x4, offset = 0x4, fixed_abs, tag = 'smem constant byte address 0x4 - core index']
  #allocation1 [shape = 'u32[144,128]{1,0:T(1,128)}', space=vmem, size = 0x12000, scoped, tag = 'internal scratch']
  %s0 = inlined_call_operand.hbm [shape: bf16[8,784], index: 0, kind: input, shape index: {}]
  %s1 = inlined_call_operand.hbm [shape: bf16[784,128], index: 1, kind: input, shape index: {}]
  %s2 = inlined_call_operand.vmem [shape: bf16[1,128], index: 2, kind: input, shape index: {}]
  %s3 = inlined_call_operand.hbm [shape: bf16[128,128], index: 3, kind: input, shape index: {}]
  %s4 = inlined_call_operand.vmem [shape: bf16[1,128], index: 4, kind: input, shape index: {}]
  %s5 = inlined_call_operand.hbm [shape: bf16[8,128], index: 5, kind: output, shape index: {}]
  %s6 = sld [smem:[#allocation0]]
  $region42: #{tpu_custom_call.1} parent=0
    _
  %s8 = ssub.s32 1, %s6
  %s9 = scalar_select 0, %s8, %s6
  $region1: #{tpu_custom_call.1} parent=0
    #allocation2 [shape = 'u8[14336]{0}', space=vmem, size = 0x3800, scoped, tag = 'input window, operand 0, single buffered']
    #allocation3 [shape = 's32[1]{0}', space=sflag, size = 0x4, scoped, tag = 'scoped memory for tpu_custom_call.1']
    #allocation4 [shape = 's32[1]{0}', space=sflag, size = 0x4, scoped, tag = 'scoped memory for tpu_custom_call.1']
    #allocation5 [shape = 'u8[200704]{0}', space=vmem, size = 0x31000, scoped, tag = 'input window, operand 1, single buffered']
    #allocation6 [shape = 's32[1]{0}', space=sflag, size = 0x4, scoped, tag = 'scoped memory for tpu_custom_call.1']
    #allocation7 [shape = 'u8[32768]{0}', space=vmem, size = 0x8000, scoped, tag = 'input window, operand 3, single buffered']
    #allocation8 [shape = 'u8[2048]{0}', space=vmem, size = 0x800, scoped, tag = 'output window, operand 0, single buffered']
    %10 = vsyncpa [#allocation3], 0
    %11 = vsyncpa [#allocation6], 0
    %12 = vsyncpa [#allocation4], 0
    // Predicated region
    $region2: #{tpu_custom_call.1} parent=1 // pred_check
      _
    $region3: #{tpu_custom_call.1} parent=1 // pred_check_branch
      %14 = sbr.rel (0) target = $region5
    $region4: #{tpu_custom_call.1} parent=1 // pred_region
      %s16 = ssub.s32 448, 448
      %17 = vsyncadd [#allocation3], %s16
      %s19 = sshll.u32 [#allocation2], 4
      %s20 = int_to_ptr.vmem [resolvable:$true] %s19
      %22 = dma.hbm_to_vmem [thread:$0]  %s0, 448, %s20, [#allocation3]
    $region5: #{tpu_custom_call.1} parent=1 // pred_fallthru
      _
    // Predicated region
    $region6: #{tpu_custom_call.1} parent=1 // pred_check
      _
    $region7: #{tpu_custom_call.1} parent=1 // pred_check_branch
      %24 = sbr.rel (0) target = $region9
    $region8: #{tpu_custom_call.1} parent=1 // pred_region
      %s26 = ssub.s32 6272, 6272
      %27 = vsyncadd [#allocation6], %s26
      %s28 = sshll.u32 [#allocation5], 4
      %s29 = int_to_ptr.vmem [resolvable:$true] %s28
      %34 = dma.hbm_to_vmem [thread:$0]  %s1, 6272, %s29, [#allocation6], 64, 64, 4
    $region9: #{tpu_custom_call.1} parent=1 // pred_fallthru
      _
    // Predicated region
    $region10: #{tpu_custom_call.1} parent=1 // pred_check
      _
    $region11: #{tpu_custom_call.1} parent=1 // pred_check_branch
      %36 = sbr.rel (0) target = $region13
    $region12: #{tpu_custom_call.1} parent=1 // pred_region
      _
    $region13: #{tpu_custom_call.1} parent=1 // pred_fallthru
      _
    // Predicated region
    $region14: #{tpu_custom_call.1} parent=1 // pred_check
      _
    $region15: #{tpu_custom_call.1} parent=1 // pred_check_branch
      %38 = sbr.rel (0) target = $region17
    $region16: #{tpu_custom_call.1} parent=1 // pred_region
      %s40 = ssub.s32 1024, 1024
      %41 = vsyncadd [#allocation6], %s40
      %s42 = sshll.u32 [#allocation7], 4
      %s43 = int_to_ptr.vmem [resolvable:$true] %s42
      %48 = dma.hbm_to_vmem [thread:$0]  %s3, 1024, %s43, [#allocation6], 64, 64, 4
    $region17: #{tpu_custom_call.1} parent=1 // pred_fallthru
      _
    // Predicated region
    $region18: #{tpu_custom_call.1} parent=1 // pred_check
      _
    $region19: #{tpu_custom_call.1} parent=1 // pred_check_branch
      %50 = sbr.rel (0) target = $region21
    $region20: #{tpu_custom_call.1} parent=1 // pred_region
      _
    $region21: #{tpu_custom_call.1} parent=1 // pred_fallthru
      _
    // Predicated region
    $region22: #{tpu_custom_call.1} parent=1 // pred_check
      _
    $region23: #{tpu_custom_call.1} parent=1 // pred_check_branch
      %52 = sbr.rel (0) target = $region25
    $region24: #{tpu_custom_call.1} parent=1 // pred_region
      %53 = dma.done [#allocation3], 448
    $region25: #{tpu_custom_call.1} parent=1 // pred_fallthru
      _
    // Predicated region
    $region26: #{tpu_custom_call.1} parent=1 // pred_check
      _
    $region27: #{tpu_custom_call.1} parent=1 // pred_check_branch
      %55 = sbr.rel (0) target = $region29
    $region28: #{tpu_custom_call.1} parent=1 // pred_region
      %56 = dma.done [#allocation6], 6272
    $region29: #{tpu_custom_call.1} parent=1 // pred_fallthru
      _
    // Predicated region
    $region30: #{tpu_custom_call.1} parent=1 // pred_check
      _
    $region31: #{tpu_custom_call.1} parent=1 // pred_check_branch
      %58 = sbr.rel (0) target = $region33
    $region32: #{tpu_custom_call.1} parent=1 // pred_region
      %59 = dma.done [#allocation6], 1024
    $region33: #{tpu_custom_call.1} parent=1 // pred_fallthru
      _
    %v61 = vld [vmem:[#allocation2] sm:$0xff]
    %v62 = vld [vmem:[#allocation2 + $0x8] sm:$0xff]
    %v63 = vld [vmem:[#allocation2 + $0x10] sm:$0xff]
    %v64 = vld [vmem:[#allocation2 + $0x18] sm:$0xf]
    %v65 = vld [vmem:[#allocation5] sm:$0xf]
    %v66 = vld [vmem:[#allocation5 + $0x4] sm:$0xf]
    %v67 = vld [vmem:[#allocation5 + $0x8] sm:$0xf]
    %v68 = vld [vmem:[#allocation5 + $0xc] sm:$0xf]
    %v69 = vld [vmem:[#allocation5 + $0x10] sm:$0xf]
    %v70 = vld [vmem:[#allocation5 + $0x14] sm:$0xf]
    %v71 = vld [vmem:[#allocation5 + $0x18] sm:$0xf]
    %v72 = vld [vmem:[#allocation5 + $0x1c] sm:$0xf]
    %v73 = vld [vmem:[#allocation5 + $0x20] sm:$0xf]
    %v74 = vld [vmem:[#allocation5 + $0x24] sm:$0xf]
    %v75 = vld [vmem:[#allocation5 + $0x28] sm:$0xf]
    %v76 = vld [vmem:[#allocation5 + $0x2c] sm:$0xf]
    %v77 = vld [vmem:[#allocation5 + $0x30] sm:$0xf]
    %v78 = vld [vmem:[#allocation5 + $0x34] sm:$0xf]
    %v79 = vld [vmem:[#allocation5 + $0x38] sm:$0xf]
    %v80 = vld [vmem:[#allocation5 + $0x3c] sm:$0xf]
    %v81 = vld [vmem:[#allocation5 + $0x40] sm:$0xf]
    %v82 = vld [vmem:[#allocation5 + $0x44] sm:$0xf]
    %v83 = vld [vmem:[#allocation5 + $0x48] sm:$0xf]
    %v84 = vld [vmem:[#allocation5 + $0x4c] sm:$0xf]
    %v85 = vld [vmem:[#allocation5 + $0x50] sm:$0xf]
    %v86 = vld [vmem:[#allocation5 + $0x54] sm:$0xf]
    %v87 = vld [vmem:[#allocation5 + $0x58] sm:$0xf]
    %v88 = vld [vmem:[#allocation5 + $0x5c] sm:$0xf]
    %v89 = vld [vmem:[#allocation5 + $0x60] sm:$0xf]
    %v90 = vld [vmem:[#allocation5 + $0x64] sm:$0xf]
    %v91 = vld [vmem:[#allocation5 + $0x68] sm:$0xf]
    %v92 = vld [vmem:[#allocation5 + $0x6c] sm:$0xf]
    %v93 = vld [vmem:[#allocation5 + $0x70] sm:$0xf]
    %v94 = vld [vmem:[#allocation5 + $0x74] sm:$0xf]
    %v95 = vld [vmem:[#allocation5 + $0x78] sm:$0xf]
    %v96 = vld [vmem:[#allocation5 + $0x7c] sm:$0xf]
    %v97 = vld [vmem:[#allocation5 + $0x80] sm:$0xf]
    %v98 = vld [vmem:[#allocation5 + $0x84] sm:$0xf]
    %v99 = vld [vmem:[#allocation5 + $0x88] sm:$0xf]
    %v100 = vld [vmem:[#allocation5 + $0x8c] sm:$0xf]
    %v101 = vld [vmem:[#allocation5 + $0x90] sm:$0xf]
    %v102 = vld [vmem:[#allocation5 + $0x94] sm:$0xf]
    %v103 = vld [vmem:[#allocation5 + $0x98] sm:$0xf]
    %v104 = vld [vmem:[#allocation5 + $0x9c] sm:$0xf]
    %v105 = vld [vmem:[#allocation5 + $0xa0] sm:$0xf]
    %v106 = vld [vmem:[#allocation5 + $0xa4] sm:$0xf]
    %v107 = vld [vmem:[#allocation5 + $0xa8] sm:$0xf]
    %v108 = vld [vmem:[#allocation5 + $0xac] sm:$0xf]
    %v109 = vld [vmem:[#allocation5 + $0xb0] sm:$0xf]
    %v110 = vld [vmem:[#allocation5 + $0xb4] sm:$0xf]
    %v111 = vld [vmem:[#allocation5 + $0xb8] sm:$0xf]
    %v112 = vld [vmem:[#allocation5 + $0xbc] sm:$0xf]
    %v113 = vld [vmem:[#allocation5 + $0xc0] sm:$0xf]
    %v114 = vld [vmem:[#allocation5 + $0xc4] sm:$0xf]
    %v115 = vld [vmem:[#allocation5 + $0xc8] sm:$0xf]
    %v116 = vld [vmem:[#allocation5 + $0xcc] sm:$0xf]
    %v117 = vld [vmem:[#allocation5 + $0xd0] sm:$0xf]
    %v118 = vld [vmem:[#allocation5 + $0xd4] sm:$0xf]
    %v119 = vld [vmem:[#allocation5 + $0xd8] sm:$0xf]
    %v120 = vld [vmem:[#allocation5 + $0xdc] sm:$0xf]
    %v121 = vld [vmem:[#allocation5 + $0xe0] sm:$0xf]
    %v122 = vld [vmem:[#allocation5 + $0xe4] sm:$0xf]
    %v123 = vld [vmem:[#allocation5 + $0xe8] sm:$0xf]
    %v124 = vld [vmem:[#allocation5 + $0xec] sm:$0xf]
    %v125 = vld [vmem:[#allocation5 + $0xf0] sm:$0xf]
    %v126 = vld [vmem:[#allocation5 + $0xf4] sm:$0xf]
    %v127 = vld [vmem:[#allocation5 + $0xf8] sm:$0xf]
    %v128 = vld [vmem:[#allocation5 + $0xfc] sm:$0xf]
    %v129 = vld [vmem:[#allocation5 + $0x100] sm:$0xf]
    %v130 = vld [vmem:[#allocation5 + $0x104] sm:$0xf]
    %v131 = vld [vmem:[#allocation5 + $0x108] sm:$0xf]
    %v132 = vld [vmem:[#allocation5 + $0x10c] sm:$0xf]
    %v133 = vld [vmem:[#allocation5 + $0x110] sm:$0xf]
    %v134 = vld [vmem:[#allocation5 + $0x114] sm:$0xf]
    %v135 = vld [vmem:[#allocation5 + $0x118] sm:$0xf]
    %v136 = vld [vmem:[#allocation5 + $0x11c] sm:$0xf]
    %v137 = vld [vmem:[#allocation5 + $0x120] sm:$0xf]
    %v138 = vld [vmem:[#allocation5 + $0x124] sm:$0xf]
    %v139 = vld [vmem:[#allocation5 + $0x128] sm:$0xf]
    %v140 = vld [vmem:[#allocation5 + $0x12c] sm:$0xf]
    %v141 = vld [vmem:[#allocation5 + $0x130] sm:$0xf]
    %v142 = vld [vmem:[#allocation5 + $0x134] sm:$0xf]
    %v143 = vld [vmem:[#allocation5 + $0x138] sm:$0xf]
    %v144 = vld [vmem:[#allocation5 + $0x13c] sm:$0xf]
    %v145 = vld [vmem:[#allocation5 + $0x140] sm:$0xf]
    %v146 = vld [vmem:[#allocation5 + $0x144] sm:$0xf]
    %v147 = vld [vmem:[#allocation5 + $0x148] sm:$0xf]
    %v148 = vld [vmem:[#allocation5 + $0x14c] sm:$0xf]
    %v149 = vld [vmem:[#allocation5 + $0x150] sm:$0xf]
    %v150 = vld [vmem:[#allocation5 + $0x154] sm:$0xf]
    %v151 = vld [vmem:[#allocation5 + $0x158] sm:$0xf]
    %v152 = vld [vmem:[#allocation5 + $0x15c] sm:$0xf]
    %v153 = vld [vmem:[#allocation5 + $0x160] sm:$0xf]
    %v154 = vld [vmem:[#allocation5 + $0x164] sm:$0xf]
    %v155 = vld [vmem:[#allocation5 + $0x168] sm:$0xf]
    %v156 = vld [vmem:[#allocation5 + $0x16c] sm:$0xf]
    %v157 = vld [vmem:[#allocation5 + $0x170] sm:$0xf]
    %v158 = vld [vmem:[#allocation5 + $0x174] sm:$0xf]
    %v159 = vld [vmem:[#allocation5 + $0x178] sm:$0xf]
    %v160 = vld [vmem:[#allocation5 + $0x17c] sm:$0xf]
    %v161 = vld [vmem:[#allocation5 + $0x180] sm:$0xf]
    %v162 = vld [vmem:[#allocation5 + $0x184] sm:$0xf]
    %v163 = vld [vmem:[%s2] sm:$0x1]
    %v164 = vunpack.c.l.bf16 %v163
    %v165 = vlaneseq
    %v166 = vshrl.u32 %v165, 7
    %v167 = vsub.s32 0, %v166
    %v168 = vrot.slane %v164, %v167
    %v173 = vunpack.c.l.b16 %v61
    %v174 = vunpack.c.h.b16 %v61
    %v175 = vunpack.c.l.b16 %v62
    %v176 = vunpack.c.h.b16 %v62
    %v177 = vunpack.c.l.b16 %v63
    %v178 = vunpack.c.h.b16 %v63
    %v179 = vunpack.c.l.b16 %v64
    %v180 = vpack.c.b16 %v173, %v173
    %v181 = vpack.c.b16 %v174, %v174
    %v182 = vpack.c.b16 %v175, %v175
    %v183 = vpack.c.b16 %v176, %v176
    %v184 = vpack.c.b16 %v177, %v177
    %v185 = vpack.c.b16 %v178, %v178
    %v186 = vpack.c.b16 %v179, %v179
    %v291 = vunpack.c.l.b16 %v65
    %v292 = vunpack.c.l.b16 %v66
    %v293 = vunpack.c.l.b16 %v67
    %v294 = vunpack.c.l.b16 %v68
    %v295 = vunpack.c.l.b16 %v69
    %v296 = vunpack.c.l.b16 %v70
    %v297 = vunpack.c.l.b16 %v71
    %v298 = vunpack.c.l.b16 %v72
    %v299 = vunpack.c.l.b16 %v73
    %v300 = vunpack.c.l.b16 %v74
    %v301 = vunpack.c.l.b16 %v75
    %v302 = vunpack.c.l.b16 %v76
    %v303 = vunpack.c.l.b16 %v77
    %v304 = vunpack.c.l.b16 %v78
    %v305 = vunpack.c.l.b16 %v79
    %v306 = vunpack.c.l.b16 %v80
    %v307 = vunpack.c.l.b16 %v81
    %v308 = vunpack.c.l.b16 %v82
    %v309 = vunpack.c.l.b16 %v83
    %v310 = vunpack.c.l.b16 %v84
    %v311 = vunpack.c.l.b16 %v85
    %v312 = vunpack.c.l.b16 %v86
    %v313 = vunpack.c.l.b16 %v87
    %v314 = vunpack.c.l.b16 %v88
    %v315 = vunpack.c.l.b16 %v89
    %v316 = vunpack.c.l.b16 %v90
    %v317 = vunpack.c.l.b16 %v91
    %v318 = vunpack.c.l.b16 %v92
    %v319 = vunpack.c.l.b16 %v93
    %v320 = vunpack.c.l.b16 %v94
    %v321 = vunpack.c.l.b16 %v95
    %v322 = vunpack.c.l.b16 %v96
    %v323 = vunpack.c.l.b16 %v97
    %v324 = vunpack.c.l.b16 %v98
    %v325 = vunpack.c.l.b16 %v99
    %v326 = vunpack.c.l.b16 %v100
    %v327 = vunpack.c.l.b16 %v101
    %v328 = vunpack.c.l.b16 %v102
    %v329 = vunpack.c.l.b16 %v103
    %v330 = vunpack.c.l.b16 %v104
    %v331 = vunpack.c.l.b16 %v105
    %v332 = vunpack.c.l.b16 %v106
    %v333 = vunpack.c.l.b16 %v107
    %v334 = vunpack.c.l.b16 %v108
    %v335 = vunpack.c.l.b16 %v109
    %v336 = vunpack.c.l.b16 %v110
    %v337 = vunpack.c.l.b16 %v111
    %v338 = vunpack.c.l.b16 %v112
    %v339 = vunpack.c.l.b16 %v113
    %v340 = vunpack.c.l.b16 %v114
    %v341 = vunpack.c.l.b16 %v115
    %v342 = vunpack.c.l.b16 %v116
    %v343 = vunpack.c.l.b16 %v117
    %v344 = vunpack.c.l.b16 %v118
    %v345 = vunpack.c.l.b16 %v119
    %v346 = vunpack.c.l.b16 %v120
    %v347 = vunpack.c.l.b16 %v121
    %v348 = vunpack.c.l.b16 %v122
    %v349 = vunpack.c.l.b16 %v123
    %v350 = vunpack.c.l.b16 %v124
    %v351 = vunpack.c.l.b16 %v125
    %v352 = vunpack.c.l.b16 %v126
    %v353 = vunpack.c.l.b16 %v127
    %v354 = vunpack.c.l.b16 %v128
    %v355 = vunpack.c.l.b16 %v129
    %v356 = vunpack.c.l.b16 %v130
    %v357 = vunpack.c.l.b16 %v131
    %v358 = vunpack.c.l.b16 %v132
    %v359 = vunpack.c.l.b16 %v133
    %v360 = vunpack.c.l.b16 %v134
    %v361 = vunpack.c.l.b16 %v135
    %v362 = vunpack.c.l.b16 %v136
    %v363 = vunpack.c.l.b16 %v137
    %v364 = vunpack.c.l.b16 %v138
    %v365 = vunpack.c.l.b16 %v139
    %v366 = vunpack.c.l.b16 %v140
    %v367 = vunpack.c.l.b16 %v141
    %v368 = vunpack.c.l.b16 %v142
    %v369 = vunpack.c.l.b16 %v143
    %v370 = vunpack.c.l.b16 %v144
    %v371 = vunpack.c.l.b16 %v145
    %v372 = vunpack.c.l.b16 %v146
    %v373 = vunpack.c.l.b16 %v147
    %v374 = vunpack.c.l.b16 %v148
    %v375 = vunpack.c.l.b16 %v149
    %v376 = vunpack.c.l.b16 %v150
    %v377 = vunpack.c.l.b16 %v151
    %v378 = vunpack.c.l.b16 %v152
    %v379 = vunpack.c.l.b16 %v153
    %v380 = vunpack.c.l.b16 %v154
    %v381 = vunpack.c.l.b16 %v155
    %v382 = vunpack.c.l.b16 %v156
    %v383 = vunpack.c.l.b16 %v157
    %v384 = vunpack.c.l.b16 %v158
    %v385 = vunpack.c.l.b16 %v159
    %v386 = vunpack.c.l.b16 %v160
    %v387 = vunpack.c.l.b16 %v161
    %v388 = vunpack.c.l.b16 %v162
    %v389 = vpack.c.b16 %v292, %v291
    %v390 = vpack.c.b16 %v294, %v293
    %v391 = vpack.c.b16 %v296, %v295
    %v392 = vpack.c.b16 %v298, %v297
    %v393 = vpack.c.b16 %v300, %v299
    %v394 = vpack.c.b16 %v302, %v301
    %v395 = vpack.c.b16 %v304, %v303
    %v396 = vpack.c.b16 %v306, %v305
    %v397 = vpack.c.b16 %v308, %v307
    %v398 = vpack.c.b16 %v310, %v309
    %v399 = vpack.c.b16 %v312, %v311
    %v400 = vpack.c.b16 %v314, %v313
    %v401 = vpack.c.b16 %v316, %v315
    %v402 = vpack.c.b16 %v318, %v317
    %v403 = vpack.c.b16 %v320, %v319
    %v404 = vpack.c.b16 %v322, %v321
    %v405 = vpack.c.b16 %v324, %v323
    %v406 = vpack.c.b16 %v326, %v325
    %v407 = vpack.c.b16 %v328, %v327
    %v408 = vpack.c.b16 %v330, %v329
    %v409 = vpack.c.b16 %v332, %v331
    %v410 = vpack.c.b16 %v334, %v333
    %v411 = vpack.c.b16 %v336, %v335
    %v412 = vpack.c.b16 %v338, %v337
    %v413 = vpack.c.b16 %v340, %v339
    %v414 = vpack.c.b16 %v342, %v341
    %v415 = vpack.c.b16 %v344, %v343
    %v416 = vpack.c.b16 %v346, %v345
    %v417 = vpack.c.b16 %v348, %v347
    %v418 = vpack.c.b16 %v350, %v349
    %v419 = vpack.c.b16 %v352, %v351
    %v420 = vpack.c.b16 %v354, %v353
    %v421 = vpack.c.b16 %v356, %v355
    %v422 = vpack.c.b16 %v358, %v357
    %v423 = vpack.c.b16 %v360, %v359
    %v424 = vpack.c.b16 %v362, %v361
    %v425 = vpack.c.b16 %v364, %v363
    %v426 = vpack.c.b16 %v366, %v365
    %v427 = vpack.c.b16 %v368, %v367
    %v428 = vpack.c.b16 %v370, %v369
    %v429 = vpack.c.b16 %v372, %v371
    %v430 = vpack.c.b16 %v374, %v373
    %v431 = vpack.c.b16 %v376, %v375
    %v432 = vpack.c.b16 %v378, %v377
    %v433 = vpack.c.b16 %v380, %v379
    %v434 = vpack.c.b16 %v382, %v381
    %v435 = vpack.c.b16 %v384, %v383
    %v436 = vpack.c.b16 %v386, %v385
    %v437 = vpack.c.b16 %v388, %v387
    %vm487 = vcmask 130048
    %v489 = vsel %vm487, %v186, 0
    %491 = vmatprep.subr.bf16.mxu0 0
    %492 = vmatpush1.bf16.msra.mxu0 %v396
    %493 = vmatprep.subr.bf16.mxu0 0
    %494 = vmatpush1.bf16.msra.mxu0 %v395
    %495 = vmatprep.subr.bf16.mxu0 0
    %496 = vmatpush1.bf16.msra.mxu0 %v394
    %497 = vmatprep.subr.bf16.mxu0 0
    %498 = vmatpush1.bf16.msra.mxu0 %v393
    %499 = vmatprep.subr.bf16.mxu0 0
    %500 = vmatpush1.bf16.msra.mxu0 %v392
    %501 = vmatprep.subr.bf16.mxu0 0
    %502 = vmatpush1.bf16.msra.mxu0 %v391
    %503 = vmatprep.subr.bf16.mxu0 0
    %504 = vmatpush1.bf16.msra.mxu0 %v390
    %505 = vmatprep.subr.bf16.mxu0 0
    %506 = vmatpush1.bf16.msra.mxu0 %v389
    %507 = vmatprep.subr.bf16.mxu0 0
    %508 = vmatpush2.bf16.msra.mxu0 %v404
    %509 = vmatprep.subr.bf16.mxu0 0
    %510 = vmatpush2.bf16.msra.mxu0 %v403
    %511 = vmatprep.subr.bf16.mxu0 0
    %512 = vmatpush2.bf16.msra.mxu0 %v402
    %513 = vmatprep.subr.bf16.mxu0 0
    %514 = vmatpush2.bf16.msra.mxu0 %v401
    %515 = vmatprep.subr.bf16.mxu0 0
    %516 = vmatpush2.bf16.msra.mxu0 %v400
    %517 = vmatprep.subr.bf16.mxu0 0
    %518 = vmatpush2.bf16.msra.mxu0 %v399
    %519 = vmatprep.subr.bf16.mxu0 0
    %520 = vmatpush2.bf16.msra.mxu0 %v398
    %521 = vmatprep.subr.bf16.mxu0 0
    %522 = vmatpush2.bf16.msra.mxu0 %v397
    %523 = vmatprep.mubr.bf16.mxu0 %v181
    %524 = vmatmul.mubr.bf16.gmra.mxu0 %v180
    %v525 = vpop.f32.mrf.mxu0
    %v526 = vadd.f32 %v168, %v525
    %v527 = vpop.f32.mrf.mxu0
    %v528 = vpop.f32.mrf.mxu0
    %v529 = vpop.f32.mrf.mxu0
    %530 = vdwg.mxu0
    %531 = vmatprep.subr.bf16.mxu0 0
    %532 = vmatpush1.bf16.msra.mxu0 %v412
    %533 = vmatprep.subr.bf16.mxu0 0
    %534 = vmatpush1.bf16.msra.mxu0 %v411
    %535 = vmatprep.subr.bf16.mxu0 0
    %536 = vmatpush1.bf16.msra.mxu0 %v410
    %537 = vmatprep.subr.bf16.mxu0 0
    %538 = vmatpush1.bf16.msra.mxu0 %v409
    %539 = vmatprep.subr.bf16.mxu0 0
    %540 = vmatpush1.bf16.msra.mxu0 %v408
    %541 = vmatprep.subr.bf16.mxu0 0
    %542 = vmatpush1.bf16.msra.mxu0 %v407
    %543 = vmatprep.subr.bf16.mxu0 0
    %544 = vmatpush1.bf16.msra.mxu0 %v406
    %545 = vmatprep.subr.bf16.mxu0 0
    %546 = vmatpush1.bf16.msra.mxu0 %v405
    %547 = vmatprep.subr.bf16.mxu0 0
    %548 = vmatpush2.bf16.msra.mxu0 %v420
    %549 = vmatprep.subr.bf16.mxu0 0
    %550 = vmatpush2.bf16.msra.mxu0 %v419
    %551 = vmatprep.subr.bf16.mxu0 0
    %552 = vmatpush2.bf16.msra.mxu0 %v418
    %553 = vmatprep.subr.bf16.mxu0 0
    %554 = vmatpush2.bf16.msra.mxu0 %v417
    %555 = vmatprep.subr.bf16.mxu0 0
    %556 = vmatpush2.bf16.msra.mxu0 %v416
    %557 = vmatprep.subr.bf16.mxu0 0
    %558 = vmatpush2.bf16.msra.mxu0 %v415
    %559 = vmatprep.subr.bf16.mxu0 0
    %560 = vmatpush2.bf16.msra.mxu0 %v414
    %561 = vmatprep.subr.bf16.mxu0 0
    %562 = vmatpush2.bf16.msra.mxu0 %v413
    %563 = vmatprep.mubr.bf16.mxu0 %v183
    %564 = vmatmul.mubr.bf16.gmra.mxu0 %v182
    %v565 = vpop.f32.mrf.mxu0
    %v566 = vadd.f32 %v526, %v565
    %v567 = vpop.f32.mrf.mxu0
    %v568 = vpop.f32.mrf.mxu0
    %v569 = vpop.f32.mrf.mxu0
    %570 = vdwg.mxu0
    %571 = vmatprep.subr.bf16.mxu0 0
    %572 = vmatpush1.bf16.msra.mxu0 %v428
    %573 = vmatprep.subr.bf16.mxu0 0
    %574 = vmatpush1.bf16.msra.mxu0 %v427
    %575 = vmatprep.subr.bf16.mxu0 0
    %576 = vmatpush1.bf16.msra.mxu0 %v426
    %577 = vmatprep.subr.bf16.mxu0 0
    %578 = vmatpush1.bf16.msra.mxu0 %v425
    %579 = vmatprep.subr.bf16.mxu0 0
    %580 = vmatpush1.bf16.msra.mxu0 %v424
    %581 = vmatprep.subr.bf16.mxu0 0
    %582 = vmatpush1.bf16.msra.mxu0 %v423
    %583 = vmatprep.subr.bf16.mxu0 0
    %584 = vmatpush1.bf16.msra.mxu0 %v422
    %585 = vmatprep.subr.bf16.mxu0 0
    %586 = vmatpush1.bf16.msra.mxu0 %v421
    %587 = vmatprep.subr.bf16.mxu0 0
    %588 = vmatpush2.bf16.msra.mxu0 %v436
    %589 = vmatprep.subr.bf16.mxu0 0
    %590 = vmatpush2.bf16.msra.mxu0 %v435
    %591 = vmatprep.subr.bf16.mxu0 0
    %592 = vmatpush2.bf16.msra.mxu0 %v434
    %593 = vmatprep.subr.bf16.mxu0 0
    %594 = vmatpush2.bf16.msra.mxu0 %v433
    %595 = vmatprep.subr.bf16.mxu0 0
    %596 = vmatpush2.bf16.msra.mxu0 %v432
    %597 = vmatprep.subr.bf16.mxu0 0
    %598 = vmatpush2.bf16.msra.mxu0 %v431
    %599 = vmatprep.subr.bf16.mxu0 0
    %600 = vmatpush2.bf16.msra.mxu0 %v430
    %601 = vmatprep.subr.bf16.mxu0 0
    %602 = vmatpush2.bf16.msra.mxu0 %v429
    %603 = vmatprep.mubr.bf16.mxu0 %v185
    %604 = vmatmul.mubr.bf16.gmra.mxu0 %v184
    %v605 = vpop.f32.mrf.mxu0
    %v606 = vadd.f32 %v566, %v605
    %v607 = vpop.f32.mrf.mxu0
    %v608 = vpop.f32.mrf.mxu0
    %v609 = vpop.f32.mrf.mxu0
    %610 = vdwg.mxu0
    %611 = vmatprep.subr.bf16.mxu0 0
    %612 = vmatpush1.bf16.msra.mxu0 0
    %613 = vmatprep.subr.bf16.mxu0 0
    %614 = vmatpush1.bf16.msra.mxu0 0
    %615 = vmatprep.subr.bf16.mxu0 0
    %616 = vmatpush1.bf16.msra.mxu0 0
    %617 = vmatprep.subr.bf16.mxu0 0
    %618 = vmatpush1.bf16.msra.mxu0 0
    %619 = vmatprep.subr.bf16.mxu0 0
    %620 = vmatpush1.bf16.msra.mxu0 0
    %621 = vmatprep.subr.bf16.mxu0 0
    %622 = vmatpush1.bf16.msra.mxu0 0
    %623 = vmatprep.subr.bf16.mxu0 0
    %624 = vmatpush1.bf16.msra.mxu0 0
    %625 = vmatprep.subr.bf16.mxu0 0
    %626 = vmatpush1.bf16.msra.mxu0 %v437
    %627 = vmatprep.subr.bf16.mxu0 0
    %628 = vmatpush2.bf16.msra.mxu0 0
    %629 = vmatprep.subr.bf16.mxu0 0
    %630 = vmatpush2.bf16.msra.mxu0 0
    %631 = vmatprep.subr.bf16.mxu0 0
    %632 = vmatpush2.bf16.msra.mxu0 0
    %633 = vmatprep.subr.bf16.mxu0 0
    %634 = vmatpush2.bf16.msra.mxu0 0
    %635 = vmatprep.subr.bf16.mxu0 0
    %636 = vmatpush2.bf16.msra.mxu0 0
    %637 = vmatprep.subr.bf16.mxu0 0
    %638 = vmatpush2.bf16.msra.mxu0 0
    %639 = vmatprep.subr.bf16.mxu0 0
    %640 = vmatpush2.bf16.msra.mxu0 0
    %641 = vmatprep.subr.bf16.mxu0 0
    %642 = vmatpush2.bf16.msra.mxu0 0
    %643 = vmatprep.mubr.bf16.mxu0 0
    %644 = vmatmul.mubr.bf16.gmra.mxu0 %v489
    %v645 = vpop.f32.mrf.mxu0
    %v646 = vadd.f32 %v606, %v645
    %v647 = vpop.f32.mrf.mxu0
    %v648 = vpop.f32.mrf.mxu0
    %v649 = vpop.f32.mrf.mxu0
    %650 = vdwg.mxu0
    %v651 = vmax.f32 %v646, 0.0
    %v652 = vpack.c.bf16 %v651, %v651
    %v653 = vld [vmem:[#allocation7] sm:$0xf]
    %v654 = vld [vmem:[#allocation7 + $0x4] sm:$0xf]
    %v655 = vld [vmem:[#allocation7 + $0x8] sm:$0xf]
    %v656 = vld [vmem:[#allocation7 + $0xc] sm:$0xf]
    %v657 = vld [vmem:[#allocation7 + $0x10] sm:$0xf]
    %v658 = vld [vmem:[#allocation7 + $0x14] sm:$0xf]
    %v659 = vld [vmem:[#allocation7 + $0x18] sm:$0xf]
    %v660 = vld [vmem:[#allocation7 + $0x1c] sm:$0xf]
    %v661 = vld [vmem:[#allocation7 + $0x20] sm:$0xf]
    %v662 = vld [vmem:[#allocation7 + $0x24] sm:$0xf]
    %v663 = vld [vmem:[#allocation7 + $0x28] sm:$0xf]
    %v664 = vld [vmem:[#allocation7 + $0x2c] sm:$0xf]
    %v665 = vld [vmem:[#allocation7 + $0x30] sm:$0xf]
    %v666 = vld [vmem:[#allocation7 + $0x34] sm:$0xf]
    %v667 = vld [vmem:[#allocation7 + $0x38] sm:$0xf]
    %v668 = vld [vmem:[#allocation7 + $0x3c] sm:$0xf]
    %v669 = vld [vmem:[%s4] sm:$0x1]
    %v670 = vunpack.c.l.bf16 %v669
    %v671 = vlaneseq
    %v672 = vshrl.u32 %v671, 7
    %v673 = vsub.s32 0, %v672
    %v674 = vrot.slane %v670, %v673
    %v691 = vunpack.c.l.b16 %v653
    %v692 = vunpack.c.l.b16 %v654
    %v693 = vunpack.c.l.b16 %v655
    %v694 = vunpack.c.l.b16 %v656
    %v695 = vunpack.c.l.b16 %v657
    %v696 = vunpack.c.l.b16 %v658
    %v697 = vunpack.c.l.b16 %v659
    %v698 = vunpack.c.l.b16 %v660
    %v699 = vunpack.c.l.b16 %v661
    %v700 = vunpack.c.l.b16 %v662
    %v701 = vunpack.c.l.b16 %v663
    %v702 = vunpack.c.l.b16 %v664
    %v703 = vunpack.c.l.b16 %v665
    %v704 = vunpack.c.l.b16 %v666
    %v705 = vunpack.c.l.b16 %v667
    %v706 = vunpack.c.l.b16 %v668
    %v707 = vpack.c.b16 %v692, %v691
    %v708 = vpack.c.b16 %v694, %v693
    %v709 = vpack.c.b16 %v696, %v695
    %v710 = vpack.c.b16 %v698, %v697
    %v711 = vpack.c.b16 %v700, %v699
    %v712 = vpack.c.b16 %v702, %v701
    %v713 = vpack.c.b16 %v704, %v703
    %v714 = vpack.c.b16 %v706, %v705
    %723 = vmatprep.subr.bf16.mxu0 0
    %724 = vmatpush1.bf16.msra.mxu0 %v714
    %725 = vmatprep.subr.bf16.mxu0 0
    %726 = vmatpush1.bf16.msra.mxu0 %v713
    %727 = vmatprep.subr.bf16.mxu0 0
    %728 = vmatpush1.bf16.msra.mxu0 %v712
    %729 = vmatprep.subr.bf16.mxu0 0
    %730 = vmatpush1.bf16.msra.mxu0 %v711
    %731 = vmatprep.subr.bf16.mxu0 0
    %732 = vmatpush1.bf16.msra.mxu0 %v710
    %733 = vmatprep.subr.bf16.mxu0 0
    %734 = vmatpush1.bf16.msra.mxu0 %v709
    %735 = vmatprep.subr.bf16.mxu0 0
    %736 = vmatpush1.bf16.msra.mxu0 %v708
    %737 = vmatprep.subr.bf16.mxu0 0
    %738 = vmatpush1.bf16.msra.mxu0 %v707
    %739 = vmatprep.subr.bf16.mxu0 0
    %740 = vmatpush2.bf16.msra.mxu0 0
    %741 = vmatprep.subr.bf16.mxu0 0
    %742 = vmatpush2.bf16.msra.mxu0 0
    %743 = vmatprep.subr.bf16.mxu0 0
    %744 = vmatpush2.bf16.msra.mxu0 0
    %745 = vmatprep.subr.bf16.mxu0 0
    %746 = vmatpush2.bf16.msra.mxu0 0
    %747 = vmatprep.subr.bf16.mxu0 0
    %748 = vmatpush2.bf16.msra.mxu0 0
    %749 = vmatprep.subr.bf16.mxu0 0
    %750 = vmatpush2.bf16.msra.mxu0 0
    %751 = vmatprep.subr.bf16.mxu0 0
    %752 = vmatpush2.bf16.msra.mxu0 0
    %753 = vmatprep.subr.bf16.mxu0 0
    %754 = vmatpush2.bf16.msra.mxu0 0
    %755 = vmatprep.mubr.bf16.mxu0 0
    %756 = vmatmul.mubr.bf16.gmra.mxu0 %v652
    %v757 = vpop.f32.mrf.mxu0
    %v758 = vadd.f32 %v674, %v757
    %v759 = vpop.f32.mrf.mxu0
    %v760 = vpop.f32.mrf.mxu0
    %v761 = vpop.f32.mrf.mxu0
    %762 = vdwg.mxu0
    %v763 = vpack.c.bf16 %v758, %v758
    %764 = vst [vmem:[#allocation8] sm:$0xf] %v763
    // Predicated region
    $region34: #{tpu_custom_call.1} parent=1 // pred_check
      _
    $region35: #{tpu_custom_call.1} parent=1 // pred_check_branch
      %766 = sbr.rel (0) target = $region37
    $region36: #{tpu_custom_call.1} parent=1 // pred_region
      %s768 = ssub.s32 64, 64
      %769 = vsyncadd [#allocation4], %s768
      %s771 = sshll.u32 [#allocation8], 4
      %s772 = int_to_ptr.vmem [resolvable:$true] %s771
      %774 = dma.vmem_to_hbm [thread:$0]  %s772, 64, %s5, [#allocation4]
    $region37: #{tpu_custom_call.1} parent=1 // pred_fallthru
      _
    // Predicated region
    $region38: #{tpu_custom_call.1} parent=1 // pred_check
      _
    $region39: #{tpu_custom_call.1} parent=1 // pred_check_branch
      %776 = sbr.rel (0) target = $region41
    $region40: #{tpu_custom_call.1} parent=1 // pred_region
      %777 = dma.done [#allocation4], 64
    $region41: #{tpu_custom_call.1} parent=1 // pred_fallthru
      _
    %778 = vsyncpa [#allocation3], 1
    %779 = vsyncpa [#allocation6], 1
    %780 = vsyncpa [#allocation4], 1

</llo_original>
